<compile_context>
chip_gen: v6e
topology: v6e:2x2x1
jax: 0.10.0
libtpu: 0.0.40
codegen_flags: <defaults>
</compile_context>

<pallas_src>
import jax
import jax.numpy as jnp
from jax.experimental import pallas as pl
from jax.experimental.pallas import tpu as pltpu


def _linear_kernel(x_ref, w_ref, b_ref, o_ref):
    # x_ref: (TM, D_in), w_ref: (D_in, D_out) [canonical layout, VMEM-resident],
    # b_ref: (1, D_out), o_ref: (TM, D_out).
    acc = jnp.dot(x_ref[...], w_ref[...], preferred_element_type=jnp.float32)
    o_ref[...] = (acc + b_ref[...].astype(jnp.float32)).astype(o_ref.dtype)


def vision_projection(x, weight, bias, *, tm=1024):
    """y = x @ weight.T + bias, matching torch.nn.Linear semantics.

    x:      (..., D_in)
    weight: (D_out, D_in)   (PyTorch layout)
    bias:   (D_out,)
    returns (..., D_out)

    tm: rows of x processed per grid step. 1024 fits every generation's default
        scoped VMEM; use 2048 on v6e/v7x (32 MiB scoped) for slightly better
        HBM-roofline utilization on large M.
    """
    d_out, d_in = weight.shape
    assert x.shape[-1] == d_in
    lead_shape = x.shape[:-1]

    x2 = x.reshape(-1, d_in)              # collapse leading dims -> (M, D_in)
    m = x2.shape[0]
    w_t = jnp.transpose(weight)           # (D_in, D_out): one-time 768 KB copy,
                                          # canonical (K, N) MXU operand layout.
    b2 = bias.reshape(1, d_out)           # (1, D_out)

    itemsize = jnp.dtype(x.dtype).itemsize
    cost = pl.CostEstimate(
        flops=2 * m * d_in * d_out,
        transcendentals=0,
        bytes_accessed=(m * d_in + d_in * d_out + d_out + m * d_out) * itemsize,
    )

    if m <= tm:
        # Genuinely small M: one MXU call, lane-dense 512-wide store, no grid.
        out = pl.pallas_call(
            _linear_kernel,
            out_shape=jax.ShapeDtypeStruct((m, d_out), x.dtype),
            in_specs=[
                pl.BlockSpec((m, d_in), lambda: (0, 0)),       # x: full block
                pl.BlockSpec((d_in, d_out), lambda: (0, 0)),   # W^T
                pl.BlockSpec((1, d_out), lambda: (0, 0)),      # bias
            ],
            out_specs=pl.BlockSpec((m, d_out), lambda: (0, 0)),
            cost_estimate=cost,
        )(x2, w_t, b2)
    else:
        # Streamed path for any large M (divisible or not): cdiv grid, Pallas masks
        # the ragged final tile. W and bias block indices never change -> DMA'd once,
        # resident in VMEM; x/out tiles are double-buffered and pipelined over M.
        out = pl.pallas_call(
            _linear_kernel,
            out_shape=jax.ShapeDtypeStruct((m, d_out), x.dtype),
            grid_spec=pltpu.PrefetchScalarGridSpec(
                num_scalar_prefetch=0,
                grid=(pl.cdiv(m, tm),),
                in_specs=[
                    pl.BlockSpec((tm, d_in), lambda i: (i, 0)),     # x tile (streamed)
                    pl.BlockSpec((d_in, d_out), lambda i: (0, 0)),  # W^T (resident)
                    pl.BlockSpec((1, d_out), lambda i: (0, 0)),     # bias (resident)
                ],
                out_specs=pl.BlockSpec((tm, d_out), lambda i: (i, 0)),
            ),
            compiler_params=pltpu.CompilerParams(
                dimension_semantics=("parallel",),   # M axis sharded across TCs (v7x)
            ),
            cost_estimate=cost,
        )(x2, w_t, b2)

    return out.reshape(*lead_shape, d_out)


if __name__ == "__main__":
    input_dim, output_dim = 384, 512
    batch = 8

    key = jax.random.PRNGKey(0)
    kx, kw, kb, kx2 = jax.random.split(key, 4)

    # Deterministic parameter init (same distribution family as nn.Linear default).
    bound = 1.0 / (input_dim ** 0.5)
    weight = jax.random.uniform(kw, (output_dim, input_dim), jnp.float32, -bound, bound)
    bias = jax.random.uniform(kb, (output_dim,), jnp.float32, -bound, bound)

    # Path 1: small-M single-block path (typical per-image call, batch=8).
    vision_embeds = jax.random.normal(kx, (batch, input_dim), jnp.float32)
    out = vision_projection(vision_embeds, weight, bias)
    out = jax.block_until_ready(out)
    ref = vision_embeds @ weight.T + bias
    assert out.shape == (batch, output_dim)
    assert jnp.allclose(out, ref, atol=1e-4, rtol=1e-4)

    # Path 2: streamed cdiv-grid path with a ragged final tile (M=600, tm=256).
    x_big = jax.random.normal(kx2, (600, input_dim), jnp.float32)
    out2 = vision_projection(x_big, weight, bias, tm=256)
    out2 = jax.block_until_ready(out2)
    ref2 = x_big @ weight.T + bias
    assert out2.shape == (600, output_dim)
    assert jnp.allclose(out2, ref2, atol=1e-4, rtol=1e-4)

    print("KERNEL_OK")
</pallas_src>

<mosaic_0001>
module attributes {stable_mosaic.version = 11 : i64} {
  func.func @_linear_kernel(%arg0: memref<8x384xf32, #tpu.memory_space<vmem>>, %arg1: memref<384x512xf32, #tpu.memory_space<vmem>>, %arg2: memref<1x512xf32, #tpu.memory_space<vmem>>, %arg3: memref<8x512xf32, #tpu.memory_space<vmem>>) attributes {dimension_semantics = [], scalar_prefetch = 0 : i64, scratch_operands = 0 : i64, tpu.core_type = #tpu.core_type<tc>} {
    %c0 = arith.constant 0 : index
    %c0_0 = arith.constant 0 : index
    %0 = vector.load %arg0[%c0, %c0_0] : memref<8x384xf32, #tpu.memory_space<vmem>>, vector<8x384xf32>
    %c0_1 = arith.constant 0 : index
    %c0_2 = arith.constant 0 : index
    %1 = vector.load %arg1[%c0_1, %c0_2] : memref<384x512xf32, #tpu.memory_space<vmem>>, vector<384x512xf32>
    %cst = arith.constant dense<0.000000e+00> : vector<8x512xf32>
    %2 = tpu.matmul %0, %1, %cst {dimension_numbers = #tpu.dot_dimension_numbers<[1], [0], [0], [1], [0, 0, 1, 1], [], []>} : vector<8x384xf32>, vector<384x512xf32>, vector<8x512xf32> -> vector<8x512xf32>
    %c0_3 = arith.constant 0 : index
    %c0_4 = arith.constant 0 : index
    %3 = vector.load %arg2[%c0_3, %c0_4] : memref<1x512xf32, #tpu.memory_space<vmem>>, vector<1x512xf32>
    %4 = vector.broadcast %3 : vector<1x512xf32> to vector<8x512xf32>
    %5 = arith.addf %2, %4 : vector<8x512xf32>
    %c0_5 = arith.constant 0 : index
    %c0_6 = arith.constant 0 : index
    %6 = vector.load %arg3[%c0_5, %c0_6] : memref<8x512xf32, #tpu.memory_space<vmem>>, vector<8x512xf32>
    tpu.vector_store %arg3[%c0_5, %c0_6], %5 {strides = array<i32>} : memref<8x512xf32, #tpu.memory_space<vmem>>, vector<8x512xf32>,
    return
  }
}

</mosaic_0001>

<llo_original>
// kernel: tpu_custom_call.1
$region0: #{tpu_custom_call.1}
  #allocation0 [shape = 'u32[]', space=smem, size = 0x4, offset = 0x4, fixed_abs, tag = 'smem constant byte address 0x4 - core index']
  #allocation1 [shape = 'u32[144,128]{1,0:T(1,128)}', space=vmem, size = 0x12000, scoped, tag = 'internal scratch']
  %s0 = inlined_call_operand.hbm [shape: f32[8,384], index: 0, kind: input, shape index: {}]
  %s1 = inlined_call_operand.hbm [shape: f32[384,512], index: 1, kind: input, shape index: {}]
  %s2 = inlined_call_operand.hbm [shape: f32[1,512], index: 2, kind: input, shape index: {}]
  %s3 = inlined_call_operand.hbm [shape: f32[8,512], index: 3, kind: output, shape index: {}]
  %s4 = sld [smem:[#allocation0]]
  $region34: #{tpu_custom_call.1} parent=0
    _
  %s6 = ssub.s32 1, %s4
  %s7 = scalar_select 0, %s6, %s4
  $region1: #{tpu_custom_call.1} parent=0
    #allocation2 [shape = 'u8[12288]{0}', space=vmem, size = 0x3000, scoped, tag = 'input window, operand 0, single buffered']
    #allocation3 [shape = 's32[1]{0}', space=sflag, size = 0x4, scoped, tag = 'scoped memory for tpu_custom_call.1']
    #allocation4 [shape = 's32[1]{0}', space=sflag, size = 0x4, scoped, tag = 'scoped memory for tpu_custom_call.1']
    #allocation5 [shape = 'u8[786432]{0}', space=vmem, size = 0xc0000, scoped, tag = 'input window, operand 1, single buffered']
    #allocation6 [shape = 's32[1]{0}', space=sflag, size = 0x4, scoped, tag = 'scoped memory for tpu_custom_call.1']
    #allocation7 [shape = 'u8[2048]{0}', space=vmem, size = 0x800, scoped, tag = 'input window, operand 2, single buffered']
    #allocation8 [shape = 'u8[16384]{0}', space=vmem, size = 0x4000, scoped, tag = 'output window, operand 0, single buffered']
    %8 = vsyncpa [#allocation3], 0
    %9 = vsyncpa [#allocation6], 0
    %10 = vsyncpa [#allocation4], 0
    // Predicated region
    $region2: #{tpu_custom_call.1} parent=1 // pred_check
      _
    $region3: #{tpu_custom_call.1} parent=1 // pred_check_branch
      %12 = sbr.rel (0) target = $region5
    $region4: #{tpu_custom_call.1} parent=1 // pred_region
      %s14 = ssub.s32 384, 384
      %15 = vsyncadd [#allocation3], %s14
      %s17 = sshll.u32 [#allocation2], 4
      %s18 = int_to_ptr.vmem [resolvable:$true] %s17
      %20 = dma.hbm_to_vmem [thread:$0]  %s0, 384, %s18, [#allocation3]
    $region5: #{tpu_custom_call.1} parent=1 // pred_fallthru
      _
    // Predicated region
    $region6: #{tpu_custom_call.1} parent=1 // pred_check
      _
    $region7: #{tpu_custom_call.1} parent=1 // pred_check_branch
      %22 = sbr.rel (0) target = $region9
    $region8: #{tpu_custom_call.1} parent=1 // pred_region
      %s24 = ssub.s32 24576, 24576
      %25 = vsyncadd [#allocation6], %s24
      %s26 = sshll.u32 [#allocation5], 4
      %s27 = int_to_ptr.vmem [resolvable:$true] %s26
      %32 = dma.hbm_to_vmem [thread:$0]  %s1, 24576, %s27, [#allocation6], 512, 512, 32
    $region9: #{tpu_custom_call.1} parent=1 // pred_fallthru
      _
    // Predicated region
    $region10: #{tpu_custom_call.1} parent=1 // pred_check
      _
    $region11: #{tpu_custom_call.1} parent=1 // pred_check_branch
      %34 = sbr.rel (0) target = $region13
    $region12: #{tpu_custom_call.1} parent=1 // pred_region
      %s36 = ssub.s32 64, 64
      %37 = vsyncadd [#allocation6], %s36
      %s39 = sshll.u32 [#allocation7], 4
      %s40 = int_to_ptr.vmem [resolvable:$true] %s39
      %42 = dma.hbm_to_vmem [thread:$0]  %s2, 64, %s40, [#allocation6]
    $region13: #{tpu_custom_call.1} parent=1 // pred_fallthru
      _
    // Predicated region
    $region14: #{tpu_custom_call.1} parent=1 // pred_check
      _
    $region15: #{tpu_custom_call.1} parent=1 // pred_check_branch
      %44 = sbr.rel (0) target = $region17
    $region16: #{tpu_custom_call.1} parent=1 // pred_region
      %45 = dma.done [#allocation3], 384
    $region17: #{tpu_custom_call.1} parent=1 // pred_fallthru
      _
    // Predicated region
    $region18: #{tpu_custom_call.1} parent=1 // pred_check
      _
    $region19: #{tpu_custom_call.1} parent=1 // pred_check_branch
      %47 = sbr.rel (0) target = $region21
    $region20: #{tpu_custom_call.1} parent=1 // pred_region
      %48 = dma.done [#allocation6], 24576
    $region21: #{tpu_custom_call.1} parent=1 // pred_fallthru
      _
    // Predicated region
    $region22: #{tpu_custom_call.1} parent=1 // pred_check
      _
    $region23: #{tpu_custom_call.1} parent=1 // pred_check_branch
      %50 = sbr.rel (0) target = $region25
    $region24: #{tpu_custom_call.1} parent=1 // pred_region
      %51 = dma.done [#allocation6], 64
    $region25: #{tpu_custom_call.1} parent=1 // pred_fallthru
      _
    %v52 = vld [vmem:[#allocation2] sm:$0xff]
    %v53 = vld [vmem:[#allocation2 + $0x8] sm:$0xff]
    %v54 = vld [vmem:[#allocation2 + $0x10] sm:$0xff]
    %v55 = vld [vmem:[#allocation5] sm:$0xff]
    %v56 = vld [vmem:[#allocation5 + $0x8] sm:$0xff]
    %v57 = vld [vmem:[#allocation5 + $0x10] sm:$0xff]
    %v58 = vld [vmem:[#allocation5 + $0x18] sm:$0xff]
    %v59 = vld [vmem:[#allocation5 + $0x20] sm:$0xff]
    %v60 = vld [vmem:[#allocation5 + $0x28] sm:$0xff]
    %v61 = vld [vmem:[#allocation5 + $0x30] sm:$0xff]
    %v62 = vld [vmem:[#allocation5 + $0x38] sm:$0xff]
    %v63 = vld [vmem:[#allocation5 + $0x40] sm:$0xff]
    %v64 = vld [vmem:[#allocation5 + $0x48] sm:$0xff]
    %v65 = vld [vmem:[#allocation5 + $0x50] sm:$0xff]
    %v66 = vld [vmem:[#allocation5 + $0x58] sm:$0xff]
    %v67 = vld [vmem:[#allocation5 + $0x60] sm:$0xff]
    %v68 = vld [vmem:[#allocation5 + $0x68] sm:$0xff]
    %v69 = vld [vmem:[#allocation5 + $0x70] sm:$0xff]
    %v70 = vld [vmem:[#allocation5 + $0x78] sm:$0xff]
    %v71 = vld [vmem:[#allocation5 + $0x80] sm:$0xff]
    %v72 = vld [vmem:[#allocation5 + $0x88] sm:$0xff]
    %v73 = vld [vmem:[#allocation5 + $0x90] sm:$0xff]
    %v74 = vld [vmem:[#allocation5 + $0x98] sm:$0xff]
    %v75 = vld [vmem:[#allocation5 + $0xa0] sm:$0xff]
    %v76 = vld [vmem:[#allocation5 + $0xa8] sm:$0xff]
    %v77 = vld [vmem:[#allocation5 + $0xb0] sm:$0xff]
    %v78 = vld [vmem:[#allocation5 + $0xb8] sm:$0xff]
    %v79 = vld [vmem:[#allocation5 + $0xc0] sm:$0xff]
    %v80 = vld [vmem:[#allocation5 + $0xc8] sm:$0xff]
    %v81 = vld [vmem:[#allocation5 + $0xd0] sm:$0xff]
    %v82 = vld [vmem:[#allocation5 + $0xd8] sm:$0xff]
    %v83 = vld [vmem:[#allocation5 + $0xe0] sm:$0xff]
    %v84 = vld [vmem:[#allocation5 + $0xe8] sm:$0xff]
    %v85 = vld [vmem:[#allocation5 + $0xf0] sm:$0xff]
    %v86 = vld [vmem:[#allocation5 + $0xf8] sm:$0xff]
    %v87 = vld [vmem:[#allocation5 + $0x100] sm:$0xff]
    %v88 = vld [vmem:[#allocation5 + $0x108] sm:$0xff]
    %v89 = vld [vmem:[#allocation5 + $0x110] sm:$0xff]
    %v90 = vld [vmem:[#allocation5 + $0x118] sm:$0xff]
    %v91 = vld [vmem:[#allocation5 + $0x120] sm:$0xff]
    %v92 = vld [vmem:[#allocation5 + $0x128] sm:$0xff]
    %v93 = vld [vmem:[#allocation5 + $0x130] sm:$0xff]
    %v94 = vld [vmem:[#allocation5 + $0x138] sm:$0xff]
    %v95 = vld [vmem:[#allocation5 + $0x140] sm:$0xff]
    %v96 = vld [vmem:[#allocation5 + $0x148] sm:$0xff]
    %v97 = vld [vmem:[#allocation5 + $0x150] sm:$0xff]
    %v98 = vld [vmem:[#allocation5 + $0x158] sm:$0xff]
    %v99 = vld [vmem:[#allocation5 + $0x160] sm:$0xff]
    %v100 = vld [vmem:[#allocation5 + $0x168] sm:$0xff]
    %v101 = vld [vmem:[#allocation5 + $0x170] sm:$0xff]
    %v102 = vld [vmem:[#allocation5 + $0x178] sm:$0xff]
    %v103 = vld [vmem:[#allocation5 + $0x180] sm:$0xff]
    %v104 = vld [vmem:[#allocation5 + $0x188] sm:$0xff]
    %v105 = vld [vmem:[#allocation5 + $0x190] sm:$0xff]
    %v106 = vld [vmem:[#allocation5 + $0x198] sm:$0xff]
    %v107 = vld [vmem:[#allocation5 + $0x1a0] sm:$0xff]
    %v108 = vld [vmem:[#allocation5 + $0x1a8] sm:$0xff]
    %v109 = vld [vmem:[#allocation5 + $0x1b0] sm:$0xff]
    %v110 = vld [vmem:[#allocation5 + $0x1b8] sm:$0xff]
    %v111 = vld [vmem:[#allocation5 + $0x1c0] sm:$0xff]
    %v112 = vld [vmem:[#allocation5 + $0x1c8] sm:$0xff]
    %v113 = vld [vmem:[#allocation5 + $0x1d0] sm:$0xff]
    %v114 = vld [vmem:[#allocation5 + $0x1d8] sm:$0xff]
    %v115 = vld [vmem:[#allocation5 + $0x1e0] sm:$0xff]
    %v116 = vld [vmem:[#allocation5 + $0x1e8] sm:$0xff]
    %v117 = vld [vmem:[#allocation5 + $0x1f0] sm:$0xff]
    %v118 = vld [vmem:[#allocation5 + $0x1f8] sm:$0xff]
    %v119 = vld [vmem:[#allocation5 + $0x200] sm:$0xff]
    %v120 = vld [vmem:[#allocation5 + $0x208] sm:$0xff]
    %v121 = vld [vmem:[#allocation5 + $0x210] sm:$0xff]
    %v122 = vld [vmem:[#allocation5 + $0x218] sm:$0xff]
    %v123 = vld [vmem:[#allocation5 + $0x220] sm:$0xff]
    %v124 = vld [vmem:[#allocation5 + $0x228] sm:$0xff]
    %v125 = vld [vmem:[#allocation5 + $0x230] sm:$0xff]
    %v126 = vld [vmem:[#allocation5 + $0x238] sm:$0xff]
    %v127 = vld [vmem:[#allocation5 + $0x240] sm:$0xff]
    %v128 = vld [vmem:[#allocation5 + $0x248] sm:$0xff]
    %v129 = vld [vmem:[#allocation5 + $0x250] sm:$0xff]
    %v130 = vld [vmem:[#allocation5 + $0x258] sm:$0xff]
    %v131 = vld [vmem:[#allocation5 + $0x260] sm:$0xff]
    %v132 = vld [vmem:[#allocation5 + $0x268] sm:$0xff]
    %v133 = vld [vmem:[#allocation5 + $0x270] sm:$0xff]
    %v134 = vld [vmem:[#allocation5 + $0x278] sm:$0xff]
    %v135 = vld [vmem:[#allocation5 + $0x280] sm:$0xff]
    %v136 = vld [vmem:[#allocation5 + $0x288] sm:$0xff]
    %v137 = vld [vmem:[#allocation5 + $0x290] sm:$0xff]
    %v138 = vld [vmem:[#allocation5 + $0x298] sm:$0xff]
    %v139 = vld [vmem:[#allocation5 + $0x2a0] sm:$0xff]
    %v140 = vld [vmem:[#allocation5 + $0x2a8] sm:$0xff]
    %v141 = vld [vmem:[#allocation5 + $0x2b0] sm:$0xff]
    %v142 = vld [vmem:[#allocation5 + $0x2b8] sm:$0xff]
    %v143 = vld [vmem:[#allocation5 + $0x2c0] sm:$0xff]
    %v144 = vld [vmem:[#allocation5 + $0x2c8] sm:$0xff]
    %v145 = vld [vmem:[#allocation5 + $0x2d0] sm:$0xff]
    %v146 = vld [vmem:[#allocation5 + $0x2d8] sm:$0xff]
    %v147 = vld [vmem:[#allocation5 + $0x2e0] sm:$0xff]
    %v148 = vld [vmem:[#allocation5 + $0x2e8] sm:$0xff]
    %v149 = vld [vmem:[#allocation5 + $0x2f0] sm:$0xff]
    %v150 = vld [vmem:[#allocation5 + $0x2f8] sm:$0xff]
    %v151 = vld [vmem:[#allocation5 + $0x300] sm:$0xff]
    %v152 = vld [vmem:[#allocation5 + $0x308] sm:$0xff]
    %v153 = vld [vmem:[#allocation5 + $0x310] sm:$0xff]
    %v154 = vld [vmem:[#allocation5 + $0x318] sm:$0xff]
    %v155 = vld [vmem:[#allocation5 + $0x320] sm:$0xff]
    %v156 = vld [vmem:[#allocation5 + $0x328] sm:$0xff]
    %v157 = vld [vmem:[#allocation5 + $0x330] sm:$0xff]
    %v158 = vld [vmem:[#allocation5 + $0x338] sm:$0xff]
    %v159 = vld [vmem:[#allocation5 + $0x340] sm:$0xff]
    %v160 = vld [vmem:[#allocation5 + $0x348] sm:$0xff]
    %v161 = vld [vmem:[#allocation5 + $0x350] sm:$0xff]
    %v162 = vld [vmem:[#allocation5 + $0x358] sm:$0xff]
    %v163 = vld [vmem:[#allocation5 + $0x360] sm:$0xff]
    %v164 = vld [vmem:[#allocation5 + $0x368] sm:$0xff]
    %v165 = vld [vmem:[#allocation5 + $0x370] sm:$0xff]
    %v166 = vld [vmem:[#allocation5 + $0x378] sm:$0xff]
    %v167 = vld [vmem:[#allocation5 + $0x380] sm:$0xff]
    %v168 = vld [vmem:[#allocation5 + $0x388] sm:$0xff]
    %v169 = vld [vmem:[#allocation5 + $0x390] sm:$0xff]
    %v170 = vld [vmem:[#allocation5 + $0x398] sm:$0xff]
    %v171 = vld [vmem:[#allocation5 + $0x3a0] sm:$0xff]
    %v172 = vld [vmem:[#allocation5 + $0x3a8] sm:$0xff]
    %v173 = vld [vmem:[#allocation5 + $0x3b0] sm:$0xff]
    %v174 = vld [vmem:[#allocation5 + $0x3b8] sm:$0xff]
    %v175 = vld [vmem:[#allocation5 + $0x3c0] sm:$0xff]
    %v176 = vld [vmem:[#allocation5 + $0x3c8] sm:$0xff]
    %v177 = vld [vmem:[#allocation5 + $0x3d0] sm:$0xff]
    %v178 = vld [vmem:[#allocation5 + $0x3d8] sm:$0xff]
    %v179 = vld [vmem:[#allocation5 + $0x3e0] sm:$0xff]
    %v180 = vld [vmem:[#allocation5 + $0x3e8] sm:$0xff]
    %v181 = vld [vmem:[#allocation5 + $0x3f0] sm:$0xff]
    %v182 = vld [vmem:[#allocation5 + $0x3f8] sm:$0xff]
    %v183 = vld [vmem:[#allocation5 + $0x400] sm:$0xff]
    %v184 = vld [vmem:[#allocation5 + $0x408] sm:$0xff]
    %v185 = vld [vmem:[#allocation5 + $0x410] sm:$0xff]
    %v186 = vld [vmem:[#allocation5 + $0x418] sm:$0xff]
    %v187 = vld [vmem:[#allocation5 + $0x420] sm:$0xff]
    %v188 = vld [vmem:[#allocation5 + $0x428] sm:$0xff]
    %v189 = vld [vmem:[#allocation5 + $0x430] sm:$0xff]
    %v190 = vld [vmem:[#allocation5 + $0x438] sm:$0xff]
    %v191 = vld [vmem:[#allocation5 + $0x440] sm:$0xff]
    %v192 = vld [vmem:[#allocation5 + $0x448] sm:$0xff]
    %v193 = vld [vmem:[#allocation5 + $0x450] sm:$0xff]
    %v194 = vld [vmem:[#allocation5 + $0x458] sm:$0xff]
    %v195 = vld [vmem:[#allocation5 + $0x460] sm:$0xff]
    %v196 = vld [vmem:[#allocation5 + $0x468] sm:$0xff]
    %v197 = vld [vmem:[#allocation5 + $0x470] sm:$0xff]
    %v198 = vld [vmem:[#allocation5 + $0x478] sm:$0xff]
    %v199 = vld [vmem:[#allocation5 + $0x480] sm:$0xff]
    %v200 = vld [vmem:[#allocation5 + $0x488] sm:$0xff]
    %v201 = vld [vmem:[#allocation5 + $0x490] sm:$0xff]
    %v202 = vld [vmem:[#allocation5 + $0x498] sm:$0xff]
    %v203 = vld [vmem:[#allocation5 + $0x4a0] sm:$0xff]
    %v204 = vld [vmem:[#allocation5 + $0x4a8] sm:$0xff]
    %v205 = vld [vmem:[#allocation5 + $0x4b0] sm:$0xff]
    %v206 = vld [vmem:[#allocation5 + $0x4b8] sm:$0xff]
    %v207 = vld [vmem:[#allocation5 + $0x4c0] sm:$0xff]
    %v208 = vld [vmem:[#allocation5 + $0x4c8] sm:$0xff]
    %v209 = vld [vmem:[#allocation5 + $0x4d0] sm:$0xff]
    %v210 = vld [vmem:[#allocation5 + $0x4d8] sm:$0xff]
    %v211 = vld [vmem:[#allocation5 + $0x4e0] sm:$0xff]
    %v212 = vld [vmem:[#allocation5 + $0x4e8] sm:$0xff]
    %v213 = vld [vmem:[#allocation5 + $0x4f0] sm:$0xff]
    %v214 = vld [vmem:[#allocation5 + $0x4f8] sm:$0xff]
    %v215 = vld [vmem:[#allocation5 + $0x500] sm:$0xff]
    %v216 = vld [vmem:[#allocation5 + $0x508] sm:$0xff]
    %v217 = vld [vmem:[#allocation5 + $0x510] sm:$0xff]
    %v218 = vld [vmem:[#allocation5 + $0x518] sm:$0xff]
    %v219 = vld [vmem:[#allocation5 + $0x520] sm:$0xff]
    %v220 = vld [vmem:[#allocation5 + $0x528] sm:$0xff]
    %v221 = vld [vmem:[#allocation5 + $0x530] sm:$0xff]
    %v222 = vld [vmem:[#allocation5 + $0x538] sm:$0xff]
    %v223 = vld [vmem:[#allocation5 + $0x540] sm:$0xff]
    %v224 = vld [vmem:[#allocation5 + $0x548] sm:$0xff]
    %v225 = vld [vmem:[#allocation5 + $0x550] sm:$0xff]
    %v226 = vld [vmem:[#allocation5 + $0x558] sm:$0xff]
    %v227 = vld [vmem:[#allocation5 + $0x560] sm:$0xff]
    %v228 = vld [vmem:[#allocation5 + $0x568] sm:$0xff]
    %v229 = vld [vmem:[#allocation5 + $0x570] sm:$0xff]
    %v230 = vld [vmem:[#allocation5 + $0x578] sm:$0xff]
    %v231 = vld [vmem:[#allocation5 + $0x580] sm:$0xff]
    %v232 = vld [vmem:[#allocation5 + $0x588] sm:$0xff]
    %v233 = vld [vmem:[#allocation5 + $0x590] sm:$0xff]
    %v234 = vld [vmem:[#allocation5 + $0x598] sm:$0xff]
    %v235 = vld [vmem:[#allocation5 + $0x5a0] sm:$0xff]
    %v236 = vld [vmem:[#allocation5 + $0x5a8] sm:$0xff]
    %v237 = vld [vmem:[#allocation5 + $0x5b0] sm:$0xff]
    %v238 = vld [vmem:[#allocation5 + $0x5b8] sm:$0xff]
    %v239 = vld [vmem:[#allocation5 + $0x5c0] sm:$0xff]
    %v240 = vld [vmem:[#allocation5 + $0x5c8] sm:$0xff]
    %v241 = vld [vmem:[#allocation5 + $0x5d0] sm:$0xff]
    %v242 = vld [vmem:[#allocation5 + $0x5d8] sm:$0xff]
    %v243 = vld [vmem:[#allocation5 + $0x5e0] sm:$0xff]
    %v244 = vld [vmem:[#allocation5 + $0x5e8] sm:$0xff]
    %v245 = vld [vmem:[#allocation5 + $0x5f0] sm:$0xff]
    %v246 = vld [vmem:[#allocation5 + $0x5f8] sm:$0xff]
    %v247 = vld [vmem:[#allocation7] sm:$0xf]
    %v249 = vlaneseq
    %v250 = vshrl.u32 %v249, 7
    %v251 = vsub.s32 0, %v250
    %v252 = vrot.slane %v247, %v251
    %v253 = vlaneseq
    %v254 = vshrl.u32 %v253, 7
    %v255 = vsub.s32 1, %v254
    %v256 = vrot.slane %v247, %v255
    %v257 = vlaneseq
    %v258 = vshrl.u32 %v257, 7
    %v259 = vsub.s32 2, %v258
    %v260 = vrot.slane %v247, %v259
    %v261 = vlaneseq
    %v262 = vshrl.u32 %v261, 7
    %v263 = vsub.s32 3, %v262
    %v264 = vrot.slane %v247, %v263
    %269 = vmatprep.subr.mxu0 %v116
    %270 = vmatpush1.msra.mxu0 %v115
    %271 = vmatprep.subr.mxu0 %v112
    %272 = vmatpush1.msra.mxu0 %v111
    %273 = vmatprep.subr.mxu0 %v108
    %274 = vmatpush1.msra.mxu0 %v107
    %275 = vmatprep.subr.mxu0 %v104
    %276 = vmatpush1.msra.mxu0 %v103
    %277 = vmatprep.subr.mxu0 %v100
    %278 = vmatpush1.msra.mxu0 %v99
    %279 = vmatprep.subr.mxu0 %v96
    %280 = vmatpush1.msra.mxu0 %v95
    %281 = vmatprep.subr.mxu0 %v92
    %282 = vmatpush1.msra.mxu0 %v91
    %283 = vmatprep.subr.mxu0 %v88
    %284 = vmatpush1.msra.mxu0 %v87
    %285 = vmatprep.subr.mxu0 %v84
    %286 = vmatpush1.msra.mxu0 %v83
    %287 = vmatprep.subr.mxu0 %v80
    %288 = vmatpush1.msra.mxu0 %v79
    %289 = vmatprep.subr.mxu0 %v76
    %290 = vmatpush1.msra.mxu0 %v75
    %291 = vmatprep.subr.mxu0 %v72
    %292 = vmatpush1.msra.mxu0 %v71
    %293 = vmatprep.subr.mxu0 %v68
    %294 = vmatpush1.msra.mxu0 %v67
    %295 = vmatprep.subr.mxu0 %v64
    %296 = vmatpush1.msra.mxu0 %v63
    %297 = vmatprep.subr.mxu0 %v60
    %298 = vmatpush1.msra.mxu0 %v59
    %299 = vmatprep.subr.mxu0 %v56
    %300 = vmatpush1.msra.mxu0 %v55
    %301 = vmatprep.subr.mxu0 %v180
    %302 = vmatpush2.msra.mxu0 %v179
    %303 = vmatprep.subr.mxu0 %v176
    %304 = vmatpush2.msra.mxu0 %v175
    %305 = vmatprep.subr.mxu0 %v172
    %306 = vmatpush2.msra.mxu0 %v171
    %307 = vmatprep.subr.mxu0 %v168
    %308 = vmatpush2.msra.mxu0 %v167
    %309 = vmatprep.subr.mxu0 %v164
    %310 = vmatpush2.msra.mxu0 %v163
    %311 = vmatprep.subr.mxu0 %v160
    %312 = vmatpush2.msra.mxu0 %v159
    %313 = vmatprep.subr.mxu0 %v156
    %314 = vmatpush2.msra.mxu0 %v155
    %315 = vmatprep.subr.mxu0 %v152
    %316 = vmatpush2.msra.mxu0 %v151
    %317 = vmatprep.subr.mxu0 %v148
    %318 = vmatpush2.msra.mxu0 %v147
    %319 = vmatprep.subr.mxu0 %v144
    %320 = vmatpush2.msra.mxu0 %v143
    %321 = vmatprep.subr.mxu0 %v140
    %322 = vmatpush2.msra.mxu0 %v139
    %323 = vmatprep.subr.mxu0 %v136
    %324 = vmatpush2.msra.mxu0 %v135
    %325 = vmatprep.subr.mxu0 %v132
    %326 = vmatpush2.msra.mxu0 %v131
    %327 = vmatprep.subr.mxu0 %v128
    %328 = vmatpush2.msra.mxu0 %v127
    %329 = vmatprep.subr.mxu0 %v124
    %330 = vmatpush2.msra.mxu0 %v123
    %331 = vmatprep.subr.mxu0 %v120
    %332 = vmatpush2.msra.mxu0 %v119
    %333 = vmatprep.mubr.f32.mxu0 %v53
    %334 = vmatmul.mubr.f32.gmra.mxu0 %v52
    %v335 = vpop.f32.mrf.mxu0
    %v336 = vadd.f32 %v252, %v335
    %v337 = vpop.f32.mrf.mxu0
    %v338 = vadd.f32 %v256, %v337
    %339 = vdwg.mxu0
    %340 = vmatprep.subr.mxu0 %v244
    %341 = vmatpush1.msra.mxu0 %v243
    %342 = vmatprep.subr.mxu0 %v240
    %343 = vmatpush1.msra.mxu0 %v239
    %344 = vmatprep.subr.mxu0 %v236
    %345 = vmatpush1.msra.mxu0 %v235
    %346 = vmatprep.subr.mxu0 %v232
    %347 = vmatpush1.msra.mxu0 %v231
    %348 = vmatprep.subr.mxu0 %v228
    %349 = vmatpush1.msra.mxu0 %v227
    %350 = vmatprep.subr.mxu0 %v224
    %351 = vmatpush1.msra.mxu0 %v223
    %352 = vmatprep.subr.mxu0 %v220
    %353 = vmatpush1.msra.mxu0 %v219
    %354 = vmatprep.subr.mxu0 %v216
    %355 = vmatpush1.msra.mxu0 %v215
    %356 = vmatprep.subr.mxu0 %v212
    %357 = vmatpush1.msra.mxu0 %v211
    %358 = vmatprep.subr.mxu0 %v208
    %359 = vmatpush1.msra.mxu0 %v207
    %360 = vmatprep.subr.mxu0 %v204
    %361 = vmatpush1.msra.mxu0 %v203
    %362 = vmatprep.subr.mxu0 %v200
    %363 = vmatpush1.msra.mxu0 %v199
    %364 = vmatprep.subr.mxu0 %v196
    %365 = vmatpush1.msra.mxu0 %v195
    %366 = vmatprep.subr.mxu0 %v192
    %367 = vmatpush1.msra.mxu0 %v191
    %368 = vmatprep.subr.mxu0 %v188
    %369 = vmatpush1.msra.mxu0 %v187
    %370 = vmatprep.subr.mxu0 %v184
    %371 = vmatpush1.msra.mxu0 %v183
    %372 = vmatprep.subr.mxu0 0.0
    %373 = vmatpush2.msra.mxu0 0.0
    %374 = vmatprep.subr.mxu0 0.0
    %375 = vmatpush2.msra.mxu0 0.0
    %376 = vmatprep.subr.mxu0 0.0
    %377 = vmatpush2.msra.mxu0 0.0
    %378 = vmatprep.subr.mxu0 0.0
    %379 = vmatpush2.msra.mxu0 0.0
    %380 = vmatprep.subr.mxu0 0.0
    %381 = vmatpush2.msra.mxu0 0.0
    %382 = vmatprep.subr.mxu0 0.0
    %383 = vmatpush2.msra.mxu0 0.0
    %384 = vmatprep.subr.mxu0 0.0
    %385 = vmatpush2.msra.mxu0 0.0
    %386 = vmatprep.subr.mxu0 0.0
    %387 = vmatpush2.msra.mxu0 0.0
    %388 = vmatprep.subr.mxu0 0.0
    %389 = vmatpush2.msra.mxu0 0.0
    %390 = vmatprep.subr.mxu0 0.0
    %391 = vmatpush2.msra.mxu0 0.0
    %392 = vmatprep.subr.mxu0 0.0
    %393 = vmatpush2.msra.mxu0 0.0
    %394 = vmatprep.subr.mxu0 0.0
    %395 = vmatpush2.msra.mxu0 0.0
    %396 = vmatprep.subr.mxu0 0.0
    %397 = vmatpush2.msra.mxu0 0.0
    %398 = vmatprep.subr.mxu0 0.0
    %399 = vmatpush2.msra.mxu0 0.0
    %400 = vmatprep.subr.mxu0 0.0
    %401 = vmatpush2.msra.mxu0 0.0
    %402 = vmatprep.subr.mxu0 0.0
    %403 = vmatpush2.msra.mxu0 0.0
    %404 = vmatprep.mubr.f32.mxu0 0.0
    %405 = vmatmul.mubr.f32.gmra.mxu0 %v54
    %v406 = vpop.f32.mrf.mxu0
    %v407 = vadd.f32 %v336, %v406
    %v408 = vpop.f32.mrf.mxu0
    %v409 = vadd.f32 %v338, %v408
    %410 = vdwg.mxu0
    %411 = vmatprep.subr.mxu0 %v118
    %412 = vmatpush1.msra.mxu0 %v117
    %413 = vmatprep.subr.mxu0 %v114
    %414 = vmatpush1.msra.mxu0 %v113
    %415 = vmatprep.subr.mxu0 %v110
    %416 = vmatpush1.msra.mxu0 %v109
    %417 = vmatprep.subr.mxu0 %v106
    %418 = vmatpush1.msra.mxu0 %v105
    %419 = vmatprep.subr.mxu0 %v102
    %420 = vmatpush1.msra.mxu0 %v101
    %421 = vmatprep.subr.mxu0 %v98
    %422 = vmatpush1.msra.mxu0 %v97
    %423 = vmatprep.subr.mxu0 %v94
    %424 = vmatpush1.msra.mxu0 %v93
    %425 = vmatprep.subr.mxu0 %v90
    %426 = vmatpush1.msra.mxu0 %v89
    %427 = vmatprep.subr.mxu0 %v86
    %428 = vmatpush1.msra.mxu0 %v85
    %429 = vmatprep.subr.mxu0 %v82
    %430 = vmatpush1.msra.mxu0 %v81
    %431 = vmatprep.subr.mxu0 %v78
    %432 = vmatpush1.msra.mxu0 %v77
    %433 = vmatprep.subr.mxu0 %v74
    %434 = vmatpush1.msra.mxu0 %v73
    %435 = vmatprep.subr.mxu0 %v70
    %436 = vmatpush1.msra.mxu0 %v69
    %437 = vmatprep.subr.mxu0 %v66
    %438 = vmatpush1.msra.mxu0 %v65
    %439 = vmatprep.subr.mxu0 %v62
    %440 = vmatpush1.msra.mxu0 %v61
    %441 = vmatprep.subr.mxu0 %v58
    %442 = vmatpush1.msra.mxu0 %v57
    %443 = vmatprep.subr.mxu0 %v182
    %444 = vmatpush2.msra.mxu0 %v181
    %445 = vmatprep.subr.mxu0 %v178
    %446 = vmatpush2.msra.mxu0 %v177
    %447 = vmatprep.subr.mxu0 %v174
    %448 = vmatpush2.msra.mxu0 %v173
    %449 = vmatprep.subr.mxu0 %v170
    %450 = vmatpush2.msra.mxu0 %v169
    %451 = vmatprep.subr.mxu0 %v166
    %452 = vmatpush2.msra.mxu0 %v165
    %453 = vmatprep.subr.mxu0 %v162
    %454 = vmatpush2.msra.mxu0 %v161
    %455 = vmatprep.subr.mxu0 %v158
    %456 = vmatpush2.msra.mxu0 %v157
    %457 = vmatprep.subr.mxu0 %v154
    %458 = vmatpush2.msra.mxu0 %v153
    %459 = vmatprep.subr.mxu0 %v150
    %460 = vmatpush2.msra.mxu0 %v149
    %461 = vmatprep.subr.mxu0 %v146
    %462 = vmatpush2.msra.mxu0 %v145
    %463 = vmatprep.subr.mxu0 %v142
    %464 = vmatpush2.msra.mxu0 %v141
    %465 = vmatprep.subr.mxu0 %v138
    %466 = vmatpush2.msra.mxu0 %v137
    %467 = vmatprep.subr.mxu0 %v134
    %468 = vmatpush2.msra.mxu0 %v133
    %469 = vmatprep.subr.mxu0 %v130
    %470 = vmatpush2.msra.mxu0 %v129
    %471 = vmatprep.subr.mxu0 %v126
    %472 = vmatpush2.msra.mxu0 %v125
    %473 = vmatprep.subr.mxu0 %v122
    %474 = vmatpush2.msra.mxu0 %v121
    %475 = vmatprep.mubr.f32.mxu0 %v53
    %476 = vmatmul.mubr.f32.gmra.mxu0 %v52
    %v477 = vpop.f32.mrf.mxu0
    %v478 = vadd.f32 %v260, %v477
    %v479 = vpop.f32.mrf.mxu0
    %v480 = vadd.f32 %v264, %v479
    %481 = vdwg.mxu0
    %482 = vmatprep.subr.mxu0 %v246
    %483 = vmatpush1.msra.mxu0 %v245
    %484 = vmatprep.subr.mxu0 %v242
    %485 = vmatpush1.msra.mxu0 %v241
    %486 = vmatprep.subr.mxu0 %v238
    %487 = vmatpush1.msra.mxu0 %v237
    %488 = vmatprep.subr.mxu0 %v234
    %489 = vmatpush1.msra.mxu0 %v233
    %490 = vmatprep.subr.mxu0 %v230
    %491 = vmatpush1.msra.mxu0 %v229
    %492 = vmatprep.subr.mxu0 %v226
    %493 = vmatpush1.msra.mxu0 %v225
    %494 = vmatprep.subr.mxu0 %v222
    %495 = vmatpush1.msra.mxu0 %v221
    %496 = vmatprep.subr.mxu0 %v218
    %497 = vmatpush1.msra.mxu0 %v217
    %498 = vmatprep.subr.mxu0 %v214
    %499 = vmatpush1.msra.mxu0 %v213
    %500 = vmatprep.subr.mxu0 %v210
    %501 = vmatpush1.msra.mxu0 %v209
    %502 = vmatprep.subr.mxu0 %v206
    %503 = vmatpush1.msra.mxu0 %v205
    %504 = vmatprep.subr.mxu0 %v202
    %505 = vmatpush1.msra.mxu0 %v201
    %506 = vmatprep.subr.mxu0 %v198
    %507 = vmatpush1.msra.mxu0 %v197
    %508 = vmatprep.subr.mxu0 %v194
    %509 = vmatpush1.msra.mxu0 %v193
    %510 = vmatprep.subr.mxu0 %v190
    %511 = vmatpush1.msra.mxu0 %v189
    %512 = vmatprep.subr.mxu0 %v186
    %513 = vmatpush1.msra.mxu0 %v185
    %514 = vmatprep.subr.mxu0 0.0
    %515 = vmatpush2.msra.mxu0 0.0
    %516 = vmatprep.subr.mxu0 0.0
    %517 = vmatpush2.msra.mxu0 0.0
    %518 = vmatprep.subr.mxu0 0.0
    %519 = vmatpush2.msra.mxu0 0.0
    %520 = vmatprep.subr.mxu0 0.0
    %521 = vmatpush2.msra.mxu0 0.0
    %522 = vmatprep.subr.mxu0 0.0
    %523 = vmatpush2.msra.mxu0 0.0
    %524 = vmatprep.subr.mxu0 0.0
    %525 = vmatpush2.msra.mxu0 0.0
    %526 = vmatprep.subr.mxu0 0.0
    %527 = vmatpush2.msra.mxu0 0.0
    %528 = vmatprep.subr.mxu0 0.0
    %529 = vmatpush2.msra.mxu0 0.0
    %530 = vmatprep.subr.mxu0 0.0
    %531 = vmatpush2.msra.mxu0 0.0
    %532 = vmatprep.subr.mxu0 0.0
    %533 = vmatpush2.msra.mxu0 0.0
    %534 = vmatprep.subr.mxu0 0.0
    %535 = vmatpush2.msra.mxu0 0.0
    %536 = vmatprep.subr.mxu0 0.0
    %537 = vmatpush2.msra.mxu0 0.0
    %538 = vmatprep.subr.mxu0 0.0
    %539 = vmatpush2.msra.mxu0 0.0
    %540 = vmatprep.subr.mxu0 0.0
    %541 = vmatpush2.msra.mxu0 0.0
    %542 = vmatprep.subr.mxu0 0.0
    %543 = vmatpush2.msra.mxu0 0.0
    %544 = vmatprep.subr.mxu0 0.0
    %545 = vmatpush2.msra.mxu0 0.0
    %546 = vmatprep.mubr.f32.mxu0 0.0
    %547 = vmatmul.mubr.f32.gmra.mxu0 %v54
    %v548 = vpop.f32.mrf.mxu0
    %v549 = vadd.f32 %v478, %v548
    %v550 = vpop.f32.mrf.mxu0
    %v551 = vadd.f32 %v480, %v550
    %552 = vdwg.mxu0
    %553 = vst [vmem:[#allocation8] sm:$0xff] %v407
    %554 = vst [vmem:[#allocation8 + $0x8] sm:$0xff] %v409
    %555 = vst [vmem:[#allocation8 + $0x10] sm:$0xff] %v549
    %556 = vst [vmem:[#allocation8 + $0x18] sm:$0xff] %v551
    // Predicated region
    $region26: #{tpu_custom_call.1} parent=1 // pred_check
      _
    $region27: #{tpu_custom_call.1} parent=1 // pred_check_branch
      %558 = sbr.rel (0) target = $region29
    $region28: #{tpu_custom_call.1} parent=1 // pred_region
      %s560 = ssub.s32 512, 512
      %561 = vsyncadd [#allocation4], %s560
      %s563 = sshll.u32 [#allocation8], 4
      %s564 = int_to_ptr.vmem [resolvable:$true] %s563
      %566 = dma.vmem_to_hbm [thread:$0]  %s564, 512, %s3, [#allocation4]
    $region29: #{tpu_custom_call.1} parent=1 // pred_fallthru
      _
    // Predicated region
    $region30: #{tpu_custom_call.1} parent=1 // pred_check
      _
    $region31: #{tpu_custom_call.1} parent=1 // pred_check_branch
      %568 = sbr.rel (0) target = $region33
    $region32: #{tpu_custom_call.1} parent=1 // pred_region
      %569 = dma.done [#allocation4], 512
    $region33: #{tpu_custom_call.1} parent=1 // pred_fallthru
      _
    %570 = vsyncpa [#allocation3], 1
    %571 = vsyncpa [#allocation6], 1
    %572 = vsyncpa [#allocation4], 1

</llo_original>
